<compile_context>
chip_gen: v7x
topology: tpu7x:2x2x1
jax: 0.10.0
libtpu: 0.0.40
codegen_flags: <defaults>
</compile_context>

<pallas_src>
import jax
import jax.numpy as jnp
from jax import lax
from jax.experimental import pallas as pl
from jax.experimental.pallas import tpu as pltpu


def _risk_kernel(x_ref, w1_ref, b1_ref, w2_ref, b2_ref, o_ref):
    # x_ref : (TB, D)  zones tile (batch on sublanes, zone_dim on lanes), f32/bf16
    # w1_ref: (H, D)   resident, PyTorch (out_features, in_features) layout
    # b1_ref: (H, 1)   resident
    # w2_ref: (1, H)   resident, PyTorch layout
    # b2_ref: (1, 1)   SMEM scalar
    # o_ref : (1, TB)  lane-dense sigmoid(logits) row for this tile
    x = x_ref[...]
    w1 = w1_ref[...].astype(x.dtype)          # bf16 zones -> bf16 MXU feed, f32 acc

    # Layer 1, feature-major: h^T = W1 . x^T -> (H, TB).  The contraction over
    # D is expressed directly (no explicit transpose of the larger activation
    # is requested); accumulation in f32 via preferred_element_type.
    ht = lax.dot_general(w1, x, (((1,), (1,)), ((), ())),
                         preferred_element_type=jnp.float32)      # (H, TB) f32
    ht = jnp.maximum(ht + b1_ref[...], 0.0)                        # ReLU (VPU)

    # Layer 2: (1, H) @ (H, TB) -> (1, TB).  Plain matmul, no h transpose, and
    # the result is already in the lane-dense (1, TB) output layout.
    logits = jnp.dot(w2_ref[...], ht, preferred_element_type=jnp.float32)
    logits = logits + b2_ref[0, 0]
    o_ref[...] = jax.nn.sigmoid(logits).astype(o_ref.dtype)        # EUP


def _round_up(x, m):
    return (x + m - 1) // m * m


def _pick_tile_and_vmem(B, H, x_itemsize, max_tile_batch=None):
    """Pick the batch tile TB and a VMEM limit from the per-core VMEM capacity."""
    try:
        vmem_cap = int(pltpu.get_tpu_info().vmem_capacity_bytes)
    except Exception:
        vmem_cap = 64 * 1024 * 1024        # conservative: v7x per-TensorCore VMEM

    # Per-row VMEM cost of one tile (f32 intermediates):
    #   x block: D=16 lanes pad to a full 128-lane vreg row -> 128*itemsize,
    #            double-buffered by the BlockSpec pipeline.
    #   h^T (H, TB) f32 (pre-bias + post-ReLU temps): ~H*8
    #   x^T staging / logits / misc compiler temps:    ~384
    per_row = 2 * 128 * x_itemsize + H * 8 + 384
    budget = int(vmem_cap * 0.60)
    tb_cap = max(512, (budget // per_row) // 512 * 512)
    tb_cap = min(tb_cap, 65536)            # ~4 MiB of zones per step is plenty
    if max_tile_batch is not None:
        tb_cap = min(tb_cap, max(8, (max_tile_batch // 8) * 8))

    if B <= tb_cap:
        TB = _round_up(B, 8)               # single tile; block may be ragged-padded
        if B > 2048:
            # Split medium single-tile batches in two so the "parallel" grid
            # axis can feed both TensorCores (megacore / v7x).
            TB = _round_up(pl.cdiv(B, 2), 512)
    else:
        TB = tb_cap                        # multiple of 512 (lane-dense out blocks)

    vmem_limit = min(int(vmem_cap * 0.75), 100 * 1024 * 1024)
    return TB, vmem_limit


def risk_estimator(zones, w1, b1, w2, b2, *, max_tile_batch=None):
    """Fused MLP forward. zones: (B, zone_dim) f32/bf16 -> (B, 1) in zones.dtype.

    w1: (32, zone_dim), b1: (32, 1), w2: (1, 32), b2: (1, 1)  (PyTorch layouts).
    No host-side pad, reshape or dtype cast of `zones` is performed.
    """
    B, D = zones.shape
    H = w1.shape[0]
    assert w1.shape == (H, D) and b1.shape == (H, 1)
    assert w2.shape == (1, H) and b2.shape == (1, 1)

    TB, vmem_limit = _pick_tile_and_vmem(B, H, zones.dtype.itemsize, max_tile_batch)
    n_tiles = pl.cdiv(B, TB)

    itemsize = zones.dtype.itemsize
    cost = pl.CostEstimate(
        flops=2 * B * D * H + 2 * B * H,
        transcendentals=B,                                   # one exp per sigmoid
        bytes_accessed=B * D * itemsize + B * itemsize + (H * D + 2 * H + 2) * 4,
    )

    out = pl.pallas_call(
        _risk_kernel,
        out_shape=jax.ShapeDtypeStruct((1, n_tiles * TB), zones.dtype),
        grid=(n_tiles,),
        in_specs=[
            # zones: streamed tiles; the ragged tail tile is clamp/masked by
            # Pallas (no jnp.pad copy of the whole array).  If DMA gaps show
            # up in a profile, add pipeline_mode=pl.Buffered(3) here.
            pl.BlockSpec((TB, D), lambda i: (i, 0)),
            pl.BlockSpec((H, D), lambda i: (0, 0)),            # w1: resident
            pl.BlockSpec((H, 1), lambda i: (0, 0)),            # b1: resident
            pl.BlockSpec((1, H), lambda i: (0, 0)),            # w2: resident
            pl.BlockSpec(memory_space=pltpu.MemorySpace.SMEM), # b2: scalar
        ],
        out_specs=pl.BlockSpec((1, TB), lambda i: (0, i)),     # lane-dense stores
        compiler_params=pltpu.CompilerParams(
            dimension_semantics=("parallel",),
            vmem_limit_bytes=vmem_limit,
        ),
        cost_estimate=cost,
    )(zones, w1, b1, w2, b2)

    # (1, n_tiles*TB) flattens row-major in batch order; drop the tile padding.
    return out.reshape(n_tiles * TB, 1)[:B]


if __name__ == "__main__":
    zone_dim, hidden = 16, 32
    key = jax.random.PRNGKey(0)
    kx, kx2, kw1, kb1, kw2, kb2 = jax.random.split(key, 6)

    # Deterministic init mimicking PyTorch nn.Linear (U(-1/sqrt(fan_in), +)).
    lim1 = 1.0 / jnp.sqrt(jnp.float32(zone_dim))
    lim2 = 1.0 / jnp.sqrt(jnp.float32(hidden))
    w1 = jax.random.uniform(kw1, (hidden, zone_dim), jnp.float32, -lim1, lim1)
    b1 = jax.random.uniform(kb1, (hidden, 1), jnp.float32, -lim1, lim1)
    w2 = jax.random.uniform(kw2, (1, hidden), jnp.float32, -lim2, lim2)
    b2 = jax.random.uniform(kb2, (1, 1), jnp.float32, -lim2, lim2)

    def reference(z):
        return jax.nn.sigmoid(jnp.maximum(z @ w1.T + b1.T, 0.0) @ w2.T + b2)

    # Small batch: single exact tile (no ragged padding path).
    zones = jax.random.normal(kx, (8, zone_dim), jnp.float32)
    out = jax.block_until_ready(risk_estimator(zones, w1, b1, w2, b2))
    assert out.shape == (8, 1)
    assert jnp.allclose(out, reference(zones), atol=1e-5, rtol=1e-5), \
        "mismatch vs reference (small)"

    # Ragged multi-tile path (tile forced small): 3 grid steps, masked tail tile.
    zones2 = jax.random.normal(kx2, (300, zone_dim), jnp.float32)
    out2 = jax.block_until_ready(
        risk_estimator(zones2, w1, b1, w2, b2, max_tile_batch=128))
    assert out2.shape == (300, 1)
    assert jnp.allclose(out2, reference(zones2), atol=1e-5, rtol=1e-5), \
        "mismatch vs reference (ragged multi-tile)"

    print("KERNEL_OK")
</pallas_src>

<mosaic_0001>
module attributes {stable_mosaic.version = 11 : i64} {
  func.func @_risk_kernel(%arg0: i32, %arg1: memref<8x16xf32, #tpu.memory_space<vmem>>, %arg2: memref<32x16xf32, #tpu.memory_space<vmem>>, %arg3: memref<32x1xf32, #tpu.memory_space<vmem>>, %arg4: memref<1x32xf32, #tpu.memory_space<vmem>>, %arg5: memref<1x1xf32, #tpu.memory_space<smem>>, %arg6: memref<1x8xf32, #tpu.memory_space<vmem>>) attributes {dimension_semantics = [#tpu.dimension_semantics<parallel>], iteration_bounds = array<i64: 1>, scalar_prefetch = 0 : i64, scratch_operands = 0 : i64, tpu.core_type = #tpu.core_type<tc>, window_params = [{transform_indices = @transform_0, window_bounds = array<i64: 8, 16>}, {pipeline_mode = #tpu.pipeline_mode<synchronous>, transform_indices = @transform_1, window_bounds = array<i64: 32, 16>}, {pipeline_mode = #tpu.pipeline_mode<synchronous>, transform_indices = @transform_2, window_bounds = array<i64: 32, 1>}, {pipeline_mode = #tpu.pipeline_mode<synchronous>, transform_indices = @transform_3, window_bounds = array<i64: 1, 32>}, {transform_indices = @transform_4, window_bounds = array<i64: 1, 1>}, {transform_indices = @transform_5, window_bounds = array<i64: 1, 8>}]} {
    %c0 = arith.constant 0 : index
    %c0_0 = arith.constant 0 : index
    %0 = vector.load %arg1[%c0, %c0_0] : memref<8x16xf32, #tpu.memory_space<vmem>>, vector<8x16xf32>
    %c0_1 = arith.constant 0 : index
    %c0_2 = arith.constant 0 : index
    %1 = vector.load %arg2[%c0_1, %c0_2] : memref<32x16xf32, #tpu.memory_space<vmem>>, vector<32x16xf32>
    %cst = arith.constant dense<0.000000e+00> : vector<32x8xf32>
    %2 = tpu.matmul %1, %0, %cst {dimension_numbers = #tpu.dot_dimension_numbers<[1], [1], [0], [0], [0, 0, 1, 0], [], []>} : vector<32x16xf32>, vector<8x16xf32>, vector<32x8xf32> -> vector<32x8xf32>
    %c0_3 = arith.constant 0 : index
    %c0_4 = arith.constant 0 : index
    %3 = vector.load %arg3[%c0_3, %c0_4] : memref<32x1xf32, #tpu.memory_space<vmem>>, vector<32x1xf32>
    %4 = vector.broadcast %3 : vector<32x1xf32> to vector<32x8xf32>
    %5 = arith.addf %2, %4 : vector<32x8xf32>
    %cst_5 = arith.constant 0.000000e+00 : f32
    %6 = vector.broadcast %cst_5 : f32 to vector<32x8xf32>
    %7 = arith.maximumf %5, %6 : vector<32x8xf32>
    %c0_6 = arith.constant 0 : index
    %c0_7 = arith.constant 0 : index
    %8 = vector.load %arg4[%c0_6, %c0_7] : memref<1x32xf32, #tpu.memory_space<vmem>>, vector<1x32xf32>
    %cst_8 = arith.constant dense<0.000000e+00> : vector<1x8xf32>
    %9 = tpu.matmul %8, %7, %cst_8 {dimension_numbers = #tpu.dot_dimension_numbers<[1], [0], [0], [1], [0, 0, 1, 1], [], []>} : vector<1x32xf32>, vector<32x8xf32>, vector<1x8xf32> -> vector<1x8xf32>
    %c0_9 = arith.constant 0 : index
    %c0_10 = arith.constant 0 : index
    %10 = memref.load %arg5[%c0_9, %c0_10] : memref<1x1xf32, #tpu.memory_space<smem>>
    %11 = vector.broadcast %10 : f32 to vector<1x8xf32>
    %12 = arith.addf %9, %11 : vector<1x8xf32>
    %13 = arith.negf %12 : vector<1x8xf32>
    %14 = math.exp %13 : vector<1x8xf32>
    %cst_11 = arith.constant 1.000000e+00 : f32
    %15 = vector.broadcast %cst_11 : f32 to vector<1x8xf32>
    %16 = arith.addf %15, %14 : vector<1x8xf32>
    %17 = arith.divf %15, %16 : vector<1x8xf32>
    %c0_12 = arith.constant 0 : index
    %c0_13 = arith.constant 0 : index
    %18 = vector.load %arg6[%c0_12, %c0_13] : memref<1x8xf32, #tpu.memory_space<vmem>>, vector<1x8xf32>
    tpu.vector_store %arg6[%c0_12, %c0_13], %17 {strides = array<i32>} : memref<1x8xf32, #tpu.memory_space<vmem>>, vector<1x8xf32>,
    return
  }
  func.func @transform_0(%arg0: i32) -> (i32, i32) {
    %c0_i32 = arith.constant 0 : i32
    %c0_i32_0 = arith.constant 0 : i32
    return %arg0, %c0_i32 : i32, i32
  }
  func.func @transform_1(%arg0: i32) -> (i32, i32) {
    %c0_i32 = arith.constant 0 : i32
    %c0_i32_0 = arith.constant 0 : i32
    %c0_i32_1 = arith.constant 0 : i32
    return %c0_i32, %c0_i32_0 : i32, i32
  }
  func.func @transform_2(%arg0: i32) -> (i32, i32) {
    %c0_i32 = arith.constant 0 : i32
    %c0_i32_0 = arith.constant 0 : i32
    %c0_i32_1 = arith.constant 0 : i32
    return %c0_i32, %c0_i32_0 : i32, i32
  }
  func.func @transform_3(%arg0: i32) -> (i32, i32) {
    %c0_i32 = arith.constant 0 : i32
    %c0_i32_0 = arith.constant 0 : i32
    %c0_i32_1 = arith.constant 0 : i32
    return %c0_i32, %c0_i32_0 : i32, i32
  }
  func.func @transform_4(%arg0: i32) -> (i32, i32) {
    %c0_i32 = arith.constant 0 : i32
    %c0_i32_0 = arith.constant 0 : i32
    %c0_i32_1 = arith.constant 0 : i32
    return %c0_i32, %c0_i32_0 : i32, i32
  }
  func.func @transform_5(%arg0: i32) -> (i32, i32) {
    %c0_i32 = arith.constant 0 : i32
    %c0_i32_0 = arith.constant 0 : i32
    return %c0_i32, %arg0 : i32, i32
  }
}

</mosaic_0001>

<llo_original>
// kernel: tpu_custom_call.1
$region0: #{tpu_custom_call.1}
  #allocation0 [shape = 'u32[]', space=smem, size = 0x4, offset = 0x4, fixed_abs, tag = 'smem constant byte address 0x4 - core index']
  #allocation1 [shape = 'u32[144,128]{1,0:T(1,128)}', space=vmem, size = 0x12000, scoped, tag = 'internal scratch']
  #allocation2 [shape = 'f32[1,1]{1,0:T(1,128)S(6)}', space=smem, size = 0x200, scoped, tag = 'scoped memory for tpu_custom_call.1']
  %s0 = inlined_call_operand.vmem [shape: f32[8,16], index: 0, kind: input, shape index: {}]
  %s1 = inlined_call_operand.vmem [shape: f32[32,16], index: 1, kind: input, shape index: {}]
  %s2 = inlined_call_operand.vmem [shape: f32[32,1], index: 2, kind: input, shape index: {}]
  %s3 = inlined_call_operand.vmem [shape: f32[1,32], index: 3, kind: input, shape index: {}]
  %s4 = inlined_call_operand.<no memory space> [shape: f32[1,1], index: 4, kind: input, shape index: {}]
  %s5 = inlined_call_operand.hbm [shape: f32[1,8], index: 5, kind: output, shape index: {}]
  %s6 = sld [smem:[#allocation0]]
  $region30: #{tpu_custom_call.1} parent=0
    _
  %s8 = ssub.s32 1, %s6
  %s9 = scalar_select 0, %s8, %s6
  %10 = sst [smem:[#allocation2]] %s4
  $region1: #{tpu_custom_call.1} parent=0
    #allocation3 [shape = 'u8[512]{0}', space=vmem, size = 0x400, scoped, tag = 'output window, operand 0, single buffered']
    #allocation4 [shape = 's32[1]{0}', space=sflag, size = 0x4, scoped, tag = 'scoped memory for tpu_custom_call.1']
    %11 = vsyncpa [#allocation4], 0
    // Predicated region
    $region2: #{tpu_custom_call.1} parent=1 // pred_check
      _
    $region3: #{tpu_custom_call.1} parent=1 // pred_check_branch
      %13 = sbr.rel (0) target = $region5
    $region4: #{tpu_custom_call.1} parent=1 // pred_region
      _
    $region5: #{tpu_custom_call.1} parent=1 // pred_fallthru
      _
    // Predicated region
    $region6: #{tpu_custom_call.1} parent=1 // pred_check
      _
    $region7: #{tpu_custom_call.1} parent=1 // pred_check_branch
      %15 = sbr.rel (0) target = $region9
    $region8: #{tpu_custom_call.1} parent=1 // pred_region
      _
    $region9: #{tpu_custom_call.1} parent=1 // pred_fallthru
      _
    // Predicated region
    $region10: #{tpu_custom_call.1} parent=1 // pred_check
      _
    $region11: #{tpu_custom_call.1} parent=1 // pred_check_branch
      %17 = sbr.rel (0) target = $region13
    $region12: #{tpu_custom_call.1} parent=1 // pred_region
      _
    $region13: #{tpu_custom_call.1} parent=1 // pred_fallthru
      _
    // Predicated region
    $region14: #{tpu_custom_call.1} parent=1 // pred_check
      _
    $region15: #{tpu_custom_call.1} parent=1 // pred_check_branch
      %19 = sbr.rel (0) target = $region17
    $region16: #{tpu_custom_call.1} parent=1 // pred_region
      _
    $region17: #{tpu_custom_call.1} parent=1 // pred_fallthru
      _
    // Predicated region
    $region18: #{tpu_custom_call.1} parent=1 // pred_check
      _
    $region19: #{tpu_custom_call.1} parent=1 // pred_check_branch
      %21 = sbr.rel (0) target = $region21
    $region20: #{tpu_custom_call.1} parent=1 // pred_region
      _
    $region21: #{tpu_custom_call.1} parent=1 // pred_fallthru
      _
    %v22 = vld [vmem:[%s0] sm:$0xff]
    %v23 = vld [vmem:[%s1] sm:$0xff]
    %v24 = vld [vmem:[%s1 + $0x8] sm:$0xff]
    %v25 = vld [vmem:[%s1 + $0x10] sm:$0xff]
    %v26 = vld [vmem:[%s1 + $0x18] sm:$0xff]
    %v27 = vld [vmem:[%s2] sm:$0xff]
    %v28 = vld [vmem:[%s2 + $0x8] sm:$0xff]
    %v29 = vld [vmem:[%s2 + $0x10] sm:$0xff]
    %v30 = vld [vmem:[%s2 + $0x18] sm:$0xff]
    %32 = vset.pattern.permute.xlu0 0
    %33 = vperm.xlu0 %32, %v27
    %v34 = vpop.permute.xlu0 %33
    %37 = vset.pattern.permute.xlu0 0
    %38 = vperm.xlu0 %37, %v28
    %v39 = vpop.permute.xlu0 %38
    %42 = vset.pattern.permute.xlu0 0
    %43 = vperm.xlu0 %42, %v29
    %v44 = vpop.permute.xlu0 %43
    %47 = vset.pattern.permute.xlu0 0
    %48 = vperm.xlu0 %47, %v30
    %v49 = vpop.permute.xlu0 %48
    %vm51 = vcmask 130048
    %v53 = vsel %vm51, %v23, 0
    %v56 = vsel %vm51, %v24, 0
    %v59 = vsel %vm51, %v25, 0
    %v62 = vsel %vm51, %v26, 0
    %v65 = vsel %vm51, %v22, 0
    %67 = vmatprep.subr.mxu0 0.0
    %68 = vmatpush1.xpose.msra.mxu0 %v65
    %69 = vmatprep.subr.mxu0 0.0
    %70 = vmatpush1.xpose.msra.mxu0 0.0
    %71 = vmatprep.subr.mxu0 0.0
    %72 = vmatpush1.xpose.msra.mxu0 0.0
    %73 = vmatprep.subr.mxu0 0.0
    %74 = vmatpush1.xpose.msra.mxu0 0.0
    %75 = vmatprep.subr.mxu0 0.0
    %76 = vmatpush1.xpose.msra.mxu0 0.0
    %77 = vmatprep.subr.mxu0 0.0
    %78 = vmatpush1.xpose.msra.mxu0 0.0
    %79 = vmatprep.subr.mxu0 0.0
    %80 = vmatpush1.xpose.msra.mxu0 0.0
    %81 = vmatprep.subr.mxu0 0.0
    %82 = vmatpush1.xpose.msra.mxu0 0.0
    %83 = vmatprep.subr.mxu0 0.0
    %84 = vmatpush1.xpose.msra.mxu0 0.0
    %85 = vmatprep.subr.mxu0 0.0
    %86 = vmatpush1.xpose.msra.mxu0 0.0
    %87 = vmatprep.subr.mxu0 0.0
    %88 = vmatpush1.xpose.msra.mxu0 0.0
    %89 = vmatprep.subr.mxu0 0.0
    %90 = vmatpush1.xpose.msra.mxu0 0.0
    %91 = vmatprep.subr.mxu0 0.0
    %92 = vmatpush1.xpose.msra.mxu0 0.0
    %93 = vmatprep.subr.mxu0 0.0
    %94 = vmatpush1.xpose.msra.mxu0 0.0
    %95 = vmatprep.subr.mxu0 0.0
    %96 = vmatpush1.xpose.msra.mxu0 0.0
    %97 = vmatprep.subr.mxu0 0.0
    %98 = vmatpush1.xpose.msra.mxu0 0.0
    %99 = vmatprep.subr.mxu0 0.0
    %100 = vmatpush1.xpose.msra.mxu0 0.0
    %101 = vmatprep.subr.mxu0 0.0
    %102 = vmatpush1.xpose.msra.mxu0 0.0
    %103 = vmatprep.subr.mxu0 0.0
    %104 = vmatpush1.xpose.msra.mxu0 0.0
    %105 = vmatprep.subr.mxu0 0.0
    %106 = vmatpush1.xpose.msra.mxu0 0.0
    %107 = vmatprep.subr.mxu0 0.0
    %108 = vmatpush1.xpose.msra.mxu0 0.0
    %109 = vmatprep.subr.mxu0 0.0
    %110 = vmatpush1.xpose.msra.mxu0 0.0
    %111 = vmatprep.subr.mxu0 0.0
    %112 = vmatpush1.xpose.msra.mxu0 0.0
    %113 = vmatprep.subr.mxu0 0.0
    %114 = vmatpush1.xpose.msra.mxu0 0.0
    %115 = vmatprep.subr.mxu0 0.0
    %116 = vmatpush1.xpose.msra.mxu0 0.0
    %117 = vmatprep.subr.mxu0 0.0
    %118 = vmatpush1.xpose.msra.mxu0 0.0
    %119 = vmatprep.subr.mxu0 0.0
    %120 = vmatpush1.xpose.msra.mxu0 0.0
    %121 = vmatprep.subr.mxu0 0.0
    %122 = vmatpush1.xpose.msra.mxu0 0.0
    %123 = vmatprep.subr.mxu0 0.0
    %124 = vmatpush1.xpose.msra.mxu0 0.0
    %125 = vmatprep.subr.mxu0 0.0
    %126 = vmatpush1.xpose.msra.mxu0 0.0
    %127 = vmatprep.subr.mxu0 0.0
    %128 = vmatpush1.xpose.msra.mxu0 0.0
    %129 = vmatprep.subr.mxu0 0.0
    %130 = vmatpush1.xpose.msra.mxu0 0.0
    %131 = vmatprep.mubr.f32.mxu0 0.0
    %132 = vmatmul.mubr.f32.gmra.mrb[0].mxu0 %v53
    %v133 = vpop.f32.mrb[0].mxu0
    %v134 = vadd.f32 %v34, %v133
    %v135 = vpop.f32.mrb[0].mxu0
    %136 = vmatprep.mubr.f32.mxu0 0.0
    %137 = vmatmul.mubr.f32.gmra.mrb[0].mxu0 %v56
    %v138 = vpop.f32.mrb[0].mxu0
    %v139 = vadd.f32 %v39, %v138
    %v140 = vpop.f32.mrb[0].mxu0
    %141 = vmatprep.mubr.f32.mxu0 0.0
    %142 = vmatmul.mubr.f32.gmra.mrb[0].mxu0 %v59
    %v143 = vpop.f32.mrb[0].mxu0
    %v144 = vadd.f32 %v44, %v143
    %v145 = vpop.f32.mrb[0].mxu0
    %146 = vmatprep.mubr.f32.mxu0 0.0
    %147 = vmatmul.mubr.f32.gmra.mrb[0].mxu0 %v62
    %v148 = vpop.f32.mrb[0].mxu0
    %v149 = vadd.f32 %v49, %v148
    %v150 = vpop.f32.mrb[0].mxu0
    %151 = vdwg.mxu0
    %v152 = vmax.f32 %v134, 0.0
    %v153 = vmax.f32 %v139, 0.0
    %v154 = vmax.f32 %v144, 0.0
    %v155 = vmax.f32 %v149, 0.0
    %v156 = vld [vmem:[%s3] sm:$0x1]
    %s157 = sld [smem:[#allocation2]]
    %v158 = vstv %s157
    %vm159 = vcmask 261120
    %v161 = vsel %vm159, %v156, 0
    %163 = vmatprep.subr.mxu0 0.0
    %164 = vmatpush1.msra.mxu0 %v152
    %165 = vmatprep.subr.mxu0 0.0
    %166 = vmatpush1.msra.mxu0 %v153
    %167 = vmatprep.subr.mxu0 0.0
    %168 = vmatpush1.msra.mxu0 %v154
    %169 = vmatprep.subr.mxu0 0.0
    %170 = vmatpush1.msra.mxu0 %v155
    %171 = vmatprep.subr.mxu0 0.0
    %172 = vmatpush1.msra.mxu0 0.0
    %173 = vmatprep.subr.mxu0 0.0
    %174 = vmatpush1.msra.mxu0 0.0
    %175 = vmatprep.subr.mxu0 0.0
    %176 = vmatpush1.msra.mxu0 0.0
    %177 = vmatprep.subr.mxu0 0.0
    %178 = vmatpush1.msra.mxu0 0.0
    %179 = vmatprep.subr.mxu0 0.0
    %180 = vmatpush1.msra.mxu0 0.0
    %181 = vmatprep.subr.mxu0 0.0
    %182 = vmatpush1.msra.mxu0 0.0
    %183 = vmatprep.subr.mxu0 0.0
    %184 = vmatpush1.msra.mxu0 0.0
    %185 = vmatprep.subr.mxu0 0.0
    %186 = vmatpush1.msra.mxu0 0.0
    %187 = vmatprep.subr.mxu0 0.0
    %188 = vmatpush1.msra.mxu0 0.0
    %189 = vmatprep.subr.mxu0 0.0
    %190 = vmatpush1.msra.mxu0 0.0
    %191 = vmatprep.subr.mxu0 0.0
    %192 = vmatpush1.msra.mxu0 0.0
    %193 = vmatprep.subr.mxu0 0.0
    %194 = vmatpush1.msra.mxu0 0.0
    %195 = vmatprep.subr.mxu0 0.0
    %196 = vmatpush1.msra.mxu0 0.0
    %197 = vmatprep.subr.mxu0 0.0
    %198 = vmatpush1.msra.mxu0 0.0
    %199 = vmatprep.subr.mxu0 0.0
    %200 = vmatpush1.msra.mxu0 0.0
    %201 = vmatprep.subr.mxu0 0.0
    %202 = vmatpush1.msra.mxu0 0.0
    %203 = vmatprep.subr.mxu0 0.0
    %204 = vmatpush1.msra.mxu0 0.0
    %205 = vmatprep.subr.mxu0 0.0
    %206 = vmatpush1.msra.mxu0 0.0
    %207 = vmatprep.subr.mxu0 0.0
    %208 = vmatpush1.msra.mxu0 0.0
    %209 = vmatprep.subr.mxu0 0.0
    %210 = vmatpush1.msra.mxu0 0.0
    %211 = vmatprep.subr.mxu0 0.0
    %212 = vmatpush1.msra.mxu0 0.0
    %213 = vmatprep.subr.mxu0 0.0
    %214 = vmatpush1.msra.mxu0 0.0
    %215 = vmatprep.subr.mxu0 0.0
    %216 = vmatpush1.msra.mxu0 0.0
    %217 = vmatprep.subr.mxu0 0.0
    %218 = vmatpush1.msra.mxu0 0.0
    %219 = vmatprep.subr.mxu0 0.0
    %220 = vmatpush1.msra.mxu0 0.0
    %221 = vmatprep.subr.mxu0 0.0
    %222 = vmatpush1.msra.mxu0 0.0
    %223 = vmatprep.subr.mxu0 0.0
    %224 = vmatpush1.msra.mxu0 0.0
    %225 = vmatprep.subr.mxu0 0.0
    %226 = vmatpush1.msra.mxu0 0.0
    %227 = vmatprep.mubr.f32.mxu0 0.0
    %228 = vmatmul.mubr.f32.gmra.mrb[0].mxu0 %v161
    %v229 = vpop.f32.mrb[0].mxu0
    %v230 = vadd.f32 %v158, %v229
    %v231 = vpop.f32.mrb[0].mxu0
    %232 = vdwg.mxu0
    %v233 = vxor.u32 %v230, 2147483648
    %v234 = vmul.f32 %v233, 1.442695
    %v235 = vpow.pop %v234
    %v236 = vadd.f32 %v235, 1.0
    %v237 = vrcp.pop %v236
    %v238 = vmul.f32 1.0, %v237
    %vm239 = vcmask 57344
    %240 = vst.msk [vmem:[#allocation3] sm:$0x1] %vm239, %v238
    // Predicated region
    $region22: #{tpu_custom_call.1} parent=1 // pred_check
      _
    $region23: #{tpu_custom_call.1} parent=1 // pred_check_branch
      %242 = sbr.rel (0) target = $region25
    $region24: #{tpu_custom_call.1} parent=1 // pred_region
      %s244 = ssub.s32 16, 16
      %245 = vsyncadd [#allocation4], %s244
      %s247 = sshll.u32 [#allocation3], 4
      %s248 = int_to_ptr.vmem [resolvable:$true] %s247
      %250 = dma.vmem_to_hbm [thread:$0]  %s248, 16, %s5, [#allocation4]
    $region25: #{tpu_custom_call.1} parent=1 // pred_fallthru
      _
    // Predicated region
    $region26: #{tpu_custom_call.1} parent=1 // pred_check
      _
    $region27: #{tpu_custom_call.1} parent=1 // pred_check_branch
      %252 = sbr.rel (0) target = $region29
    $region28: #{tpu_custom_call.1} parent=1 // pred_region
      %253 = dma.done [#allocation4], 16
    $region29: #{tpu_custom_call.1} parent=1 // pred_fallthru
      _
    %254 = vsyncpa [#allocation4], 1

</llo_original>
